<compile_context>
chip_gen: v5e
topology: v5e:2x2
jax: 0.10.0
libtpu: 0.0.40
codegen_flags: <defaults>
</compile_context>

<pallas_src>
import jax
import jax.numpy as jnp
from jax.experimental import pallas as pl
from jax.experimental.pallas import tpu as pltpu


# Below this many elements, XLA's fused elementwise op beats the pallas_call
# launch + reshape plumbing for a purely HBM-bound broadcast multiply.
_SMALL_N_THRESHOLD = 1 << 18  # 256K elements


def _harmonic_kernel(neg_z_ref, x_ref, o_ref):
    # neg_z_ref: (1,) f32 scalar in SMEM (already negated in the wrapper)
    # x_ref / o_ref: (tile_r, lane) tiles in VMEM
    o_ref[...] = (neg_z_ref[0] * x_ref[...]).astype(o_ref.dtype)


def _chip_tuning():
    """Return (target_block_bytes, vmem_limit_bytes_or_None, min_pipeline_blocks)."""
    kind = ""
    try:
        kind = jax.devices()[0].device_kind.lower()
    except Exception:
        pass
    if "7" in kind:
        # v7x: ~3.2 TB/s HBM per TC -> bigger blocks to amortize per-step
        # overhead; 64 MiB physical VMEM but 32 MiB default scoped limit, so
        # raise the limit explicitly (4 x 8 MiB double-buffered residency).
        return 8 * 1024 * 1024, 48 * 1024 * 1024, 4
    if "v6" in kind or "6e" in kind:
        # v6e: ~16 MiB resident with double buffering, inside 32 MiB default.
        return 4 * 1024 * 1024, None, 2
    # v5e / unknown: stay well inside the 16 MiB default scoped VMEM limit.
    return 2 * 1024 * 1024, None, 2


def harmonic_net_forward(x, z, small_n_threshold=_SMALL_N_THRESHOLD):
    """Compute -z * x (HarmonicNet.forward) with a tiled, pipelined Pallas TPU kernel.

    x: array of any shape (the PyTorch module is purely elementwise), f32/bf16.
    z: scalar parameter (the OU restoring coefficient Z).
    small_n_threshold: below this many elements, use a plain XLA multiply.
    """
    orig_shape = x.shape
    dtype = x.dtype
    n = x.size
    itemsize = jnp.dtype(dtype).itemsize

    neg_z_f32 = -jnp.asarray(z, dtype=jnp.float32)

    # Small / empty inputs: XLA's single fused elementwise pass is already at
    # roofline; skip the pallas_call entirely.
    if n < small_n_threshold:
        return (neg_z_f32 * x).astype(dtype).reshape(orig_shape)

    x_flat = x.reshape(-1)

    # Aligned prefix (multiple of 128 lanes) goes through the kernel; the
    # <128-element tail (if any) is a negligible fused XLA op. No full-array
    # pad or trailing slice passes over HBM.
    n_aligned = (n // 128) * 128
    tail = n - n_aligned
    if n_aligned == 0:  # degenerate tiny/empty input
        return (neg_z_f32 * x).astype(dtype).reshape(orig_shape)
    x_main = x_flat[:n_aligned] if tail else x_flat

    # Widest lane-dense layout that divides the aligned prefix -> long
    # contiguous DMAs and full unmasked vector stores.
    lane = 128
    for cand in (2048, 1024, 512, 256):
        if n_aligned % cand == 0:
            lane = cand
            break

    rows = n_aligned // lane
    x2d = x_main.reshape(rows, lane)

    # Sublane granularity per dtype: f32 -> 8, bf16 -> 16, int8/fp8 -> 32.
    sublane = {4: 8, 2: 16, 1: 32}.get(itemsize, 8)

    target_block_bytes, vmem_limit_bytes, min_blocks = _chip_tuning()

    # Tile rows so each block is ~target_block_bytes; with in + out each
    # double-buffered, resident VMEM ~ 4x the block size.
    tile_r = max(sublane, target_block_bytes // (lane * itemsize))
    tile_r = (tile_r // sublane) * sublane
    if tile_r >= rows:
        # A single-block grid serializes DMA-in / compute / DMA-out and leaves
        # the second v7x TensorCore idle; split into a few pipelined blocks
        # whenever sublane granularity allows it.
        split = (rows // min_blocks // sublane) * sublane
        tile_r = split if split >= sublane else rows

    grid = (pl.cdiv(rows, tile_r),)

    # Precompute -Z once; the kernel is a single broadcast multiply.
    neg_z = neg_z_f32.reshape(1)

    compiler_kwargs = dict(dimension_semantics=("parallel",))
    if vmem_limit_bytes is not None:
        compiler_kwargs["vmem_limit_bytes"] = vmem_limit_bytes

    out2d = pl.pallas_call(
        _harmonic_kernel,
        out_shape=jax.ShapeDtypeStruct((rows, lane), dtype),
        grid_spec=pltpu.PrefetchScalarGridSpec(
            num_scalar_prefetch=0,
            grid=grid,
            in_specs=[
                pl.BlockSpec(memory_space=pltpu.SMEM),           # -Z scalar
                pl.BlockSpec((tile_r, lane), lambda i: (i, 0)),  # x tile
            ],
            out_specs=pl.BlockSpec((tile_r, lane), lambda i: (i, 0)),
        ),
        compiler_params=pltpu.CompilerParams(**compiler_kwargs),
        cost_estimate=pl.CostEstimate(
            flops=n_aligned,
            transcendentals=0,
            bytes_accessed=2 * n_aligned * itemsize,
        ),
    )(neg_z, x2d)

    out_main = out2d.reshape(-1)
    if tail:
        out_tail = (neg_z_f32 * x_flat[n_aligned:]).astype(dtype)
        out_main = jnp.concatenate([out_main, out_tail])
    return out_main.reshape(orig_shape)


if __name__ == "__main__":
    # Deterministic parameter init (hparams.Z)
    Z = jnp.float32(1.5)
    key = jax.random.PRNGKey(0)

    # Small NCHW input consistent with the module's elementwise forward.
    x = jax.random.normal(key, (2, 4, 16, 16), dtype=jnp.float32)
    ref = -Z * x

    # 1) Force the Pallas path even at this small size so the kernel runs.
    out = jax.block_until_ready(harmonic_net_forward(x, Z, small_n_threshold=0))
    assert out.shape == x.shape and out.dtype == x.dtype
    assert jnp.allclose(out, ref, atol=1e-6, rtol=1e-6)

    # 2) Default path: small-input fast path (pure XLA) must match as well.
    out_fast = jax.block_until_ready(harmonic_net_forward(x, Z))
    assert jnp.allclose(out_fast, ref, atol=1e-6, rtol=1e-6)

    # 3) Non-128-divisible element count exercises the aligned-prefix + tail path.
    x_odd = jax.random.normal(jax.random.PRNGKey(0), (3, 5, 7, 11), dtype=jnp.float32)
    out_odd = jax.block_until_ready(harmonic_net_forward(x_odd, Z, small_n_threshold=0))
    assert jnp.allclose(out_odd, -Z * x_odd, atol=1e-6, rtol=1e-6)

    print("KERNEL_OK")
</pallas_src>

<mosaic_0001>
module attributes {stable_mosaic.version = 11 : i64} {
  func.func @_harmonic_kernel(%arg0: i32, %arg1: memref<1xf32, #tpu.memory_space<smem>>, %arg2: memref<1x2048xf32, #tpu.memory_space<vmem>>, %arg3: memref<1x2048xf32, #tpu.memory_space<vmem>>) attributes {dimension_semantics = [#tpu.dimension_semantics<parallel>], iteration_bounds = array<i64: 1>, scalar_prefetch = 0 : i64, scratch_operands = 0 : i64, tpu.core_type = #tpu.core_type<tc>, window_params = [{transform_indices = @transform_0, window_bounds = array<i64: 1>}, {transform_indices = @transform_1, window_bounds = array<i64: 1, 2048>}, {transform_indices = @transform_2, window_bounds = array<i64: 1, 2048>}]} {
    %c0 = arith.constant 0 : index
    %0 = memref.load %arg1[%c0] : memref<1xf32, #tpu.memory_space<smem>>
    %c0_0 = arith.constant 0 : index
    %c0_1 = arith.constant 0 : index
    %1 = vector.load %arg2[%c0_0, %c0_1] : memref<1x2048xf32, #tpu.memory_space<vmem>>, vector<1x2048xf32>
    %2 = vector.broadcast %0 : f32 to vector<1x2048xf32>
    %3 = arith.mulf %2, %1 : vector<1x2048xf32>
    %c0_2 = arith.constant 0 : index
    %c0_3 = arith.constant 0 : index
    %4 = vector.load %arg3[%c0_2, %c0_3] : memref<1x2048xf32, #tpu.memory_space<vmem>>, vector<1x2048xf32>
    tpu.vector_store %arg3[%c0_2, %c0_3], %3 {strides = array<i32>} : memref<1x2048xf32, #tpu.memory_space<vmem>>, vector<1x2048xf32>,
    return
  }
  func.func @transform_0(%arg0: i32) -> i32 {
    %c0_i32 = arith.constant 0 : i32
    %c0_i32_0 = arith.constant 0 : i32
    return %c0_i32 : i32
  }
  func.func @transform_1(%arg0: i32) -> (i32, i32) {
    %c0_i32 = arith.constant 0 : i32
    %c0_i32_0 = arith.constant 0 : i32
    return %arg0, %c0_i32 : i32, i32
  }
  func.func @transform_2(%arg0: i32) -> (i32, i32) {
    %c0_i32 = arith.constant 0 : i32
    %c0_i32_0 = arith.constant 0 : i32
    return %arg0, %c0_i32 : i32, i32
  }
}

</mosaic_0001>

<llo_original>
// kernel: tpu_custom_call.1
$region0: #{tpu_custom_call.1}
  #allocation0 [shape = 'u32[]', space=smem, size = 0x4, offset = 0x4, fixed_abs, tag = 'smem constant byte address 0x4 - core index']
  #allocation1 [shape = 'u32[72,128]{1,0:T(1,128)}', space=vmem, size = 0x9000, scoped, tag = 'internal scratch']
  #allocation2 [shape = 'f32[1]{0:T(128)S(6)}', space=smem, size = 0x200, scoped, tag = 'scoped memory for tpu_custom_call.1']
  %s0 = inlined_call_operand.<no memory space> [shape: f32[1], index: 0, kind: input, shape index: {}]
  %s1 = inlined_call_operand.hbm [shape: f32[1,2048], index: 1, kind: input, shape index: {}]
  %s2 = inlined_call_operand.hbm [shape: f32[1,2048], index: 2, kind: output, shape index: {}]
  %s3 = sld [smem:[#allocation0]]
  $region22: #{tpu_custom_call.1} parent=0
    _
  %s5 = ssub.s32 1, %s3
  %s6 = scalar_select 0, %s5, %s3
  %7 = sst [smem:[#allocation2]] %s0
  $region1: #{tpu_custom_call.1} parent=0
    #allocation3 [shape = 'u8[8192]{0}', space=vmem, size = 0x2000, scoped, tag = 'input window, operand 1, single buffered']
    #allocation4 [shape = 's32[1]{0}', space=sflag, size = 0x4, scoped, tag = 'scoped memory for tpu_custom_call.1']
    #allocation5 [shape = 's32[1]{0}', space=sflag, size = 0x4, scoped, tag = 'scoped memory for tpu_custom_call.1']
    #allocation6 [shape = 'u8[8192]{0}', space=vmem, size = 0x2000, scoped, tag = 'output window, operand 0, single buffered']
    %8 = vsyncpa [#allocation4], 0
    %9 = vsyncpa [#allocation5], 0
    // Predicated region
    $region2: #{tpu_custom_call.1} parent=1 // pred_check
      _
    $region3: #{tpu_custom_call.1} parent=1 // pred_check_branch
      %11 = sbr.rel (0) target = $region5
    $region4: #{tpu_custom_call.1} parent=1 // pred_region
      _
    $region5: #{tpu_custom_call.1} parent=1 // pred_fallthru
      _
    // Predicated region
    $region6: #{tpu_custom_call.1} parent=1 // pred_check
      _
    $region7: #{tpu_custom_call.1} parent=1 // pred_check_branch
      %13 = sbr.rel (0) target = $region9
    $region8: #{tpu_custom_call.1} parent=1 // pred_region
      %15 = vsyncadd [#allocation4], 0
      %s17 = sshll.u32 %s1, 4
      %s18 = int_to_ptr.hbm [resolvable:$true] %s17
      %s19 = sshll.u32 [#allocation3], 4
      %s20 = int_to_ptr.vmem [resolvable:$true] %s19
      %22 = dma.hbm_to_vmem [thread:$0]  %s18, 256, %s20, [#allocation4]
    $region9: #{tpu_custom_call.1} parent=1 // pred_fallthru
      _
    // Predicated region
    $region10: #{tpu_custom_call.1} parent=1 // pred_check
      _
    $region11: #{tpu_custom_call.1} parent=1 // pred_check_branch
      %24 = sbr.rel (0) target = $region13
    $region12: #{tpu_custom_call.1} parent=1 // pred_region
      %26 = dma.done [#allocation4], 256
    $region13: #{tpu_custom_call.1} parent=1 // pred_fallthru
      _
    %s27 = sld [smem:[#allocation2]]
    %v28 = vld [vmem:[#allocation3] sm:$0xff]
    %v29 = vld [vmem:[#allocation3 + $0x8] sm:$0xff]
    %v30 = vstv %s27
    %v31 = vmul.f32 %v30, %v28
    %v32 = vmul.f32 %v30, %v29
    %33 = vst [vmem:[#allocation6] sm:$0xff] %v31
    %34 = vst [vmem:[#allocation6 + $0x8] sm:$0xff] %v32
    // Predicated region
    $region14: #{tpu_custom_call.1} parent=1 // pred_check
      _
    $region15: #{tpu_custom_call.1} parent=1 // pred_check_branch
      %36 = sbr.rel (0) target = $region17
    $region16: #{tpu_custom_call.1} parent=1 // pred_region
      %38 = vsyncadd [#allocation5], 0
      %s40 = sshll.u32 [#allocation6], 4
      %s41 = int_to_ptr.vmem [resolvable:$true] %s40
      %s42 = sshll.u32 %s2, 4
      %s43 = int_to_ptr.hbm [resolvable:$true] %s42
      %45 = dma.vmem_to_hbm [thread:$0]  %s41, 256, %s43, [#allocation5]
    $region17: #{tpu_custom_call.1} parent=1 // pred_fallthru
      _
    // Predicated region
    $region18: #{tpu_custom_call.1} parent=1 // pred_check
      _
    $region19: #{tpu_custom_call.1} parent=1 // pred_check_branch
      %47 = sbr.rel (0) target = $region21
    $region20: #{tpu_custom_call.1} parent=1 // pred_region
      %49 = dma.done [#allocation5], 256
    $region21: #{tpu_custom_call.1} parent=1 // pred_fallthru
      _
    %50 = vsyncpa [#allocation4], 1
    %51 = vsyncpa [#allocation5], 1

</llo_original>
